<compile_context>
chip_gen: v7x
topology: tpu7x:2x2x1
jax: 0.10.0
libtpu: 0.0.40
codegen_flags: <defaults>
</compile_context>

<pallas_src>
import functools

import jax
import jax.numpy as jnp
from jax import lax
from jax.experimental import pallas as pl
from jax.experimental.pallas import tpu as pltpu

_EPS = 1e-8                         # F.cosine_similarity eps
_VMEM_CAP = 48 * 1024 * 1024        # scoped-VMEM ceiling (safe on v7x's 64 MiB)
_TABLE_BUDGET = 24 * 1024 * 1024    # resident-table (double-buffered) budget
_TILE_BUDGET = 16 * 1024 * 1024     # per-tile gather-scratch / streaming budget


def _round_up(x, m):
    return ((x + m - 1) // m) * m


# ---------------------------------------------------------------------------
# Shared per-tile math (VPU / XLU / EUP work only; no MXU needed).
# ---------------------------------------------------------------------------
def _inv_norm(x):
    # 1 / max(||x||, eps) == rsqrt(max(sum(x^2), eps^2)); rsqrt -> EUP slot.
    ss = jnp.sum(x * x, axis=-1, keepdims=True)
    return lax.rsqrt(jnp.maximum(ss, _EPS * _EPS))


def _rowdot(x, y):
    return jnp.sum(x * y, axis=-1, keepdims=True)


def _neg_log_sigmoid(z):
    # -log(sigmoid(z)) == softplus(-z), numerically stable (log1p form).
    return jnp.maximum(-z, 0.0) + jnp.log1p(jnp.exp(-jnp.abs(z)))


def _tile_loss(pairs, knowledge_weight):
    """pairs = [(img1, img2), (txt1, txt2)] + optional [(name1, name2)]
    + optional [(graph1, graph2)], each (TM, D_t) float32.
    Returns the per-link loss (TM, 1) float32."""
    (i1, i2), (t1, t2) = pairs[0], pairs[1]
    inv_i1, inv_i2 = _inv_norm(i1), _inv_norm(i2)
    inv_t1, inv_t2 = _inv_norm(t1), _inv_norm(t2)
    z_align = (_rowdot(i1, t2) * (inv_i1 * inv_t2)
               + _rowdot(i1, i2) * (inv_i1 * inv_i2)
               + _rowdot(t1, t2) * (inv_t1 * inv_t2))
    per_link = _neg_log_sigmoid(z_align)
    for (a, b) in pairs[2:]:
        z = _rowdot(a, b) * (_inv_norm(a) * _inv_norm(b))
        per_link = per_link + knowledge_weight * _neg_log_sigmoid(z)
    return per_link


# ---------------------------------------------------------------------------
# Primary kernel: resident tables in VMEM + in-kernel row gather.
# ---------------------------------------------------------------------------
def _resident_kernel(e1_ref, e2_ref, *refs, n_tables, table_rows, tm, m_links,
                     tiles_per_split, knowledge_weight):
    table_refs = refs[:n_tables]            # (N_t, D_t), VMEM-resident
    out_ref = refs[n_tables]                # (1, 1) partial sum for this split
    acc_ref = refs[n_tables + 1]            # (1, 1) f32 accumulator scratch
    gath_refs = refs[n_tables + 2:]         # 2 * n_tables  (tm, D_t) scratches

    c = pl.program_id(0)                    # split (2 TensorCores on v7x)
    i = pl.program_id(1)                    # link tile within split
    n_inner = pl.num_programs(1)
    base = (c * tiles_per_split + i) * tm

    @pl.when(i == 0)
    def _init():
        acc_ref[...] = jnp.zeros_like(acc_ref)

    # ---- in-kernel row gather from the resident tables ----------------------
    def gather_one(j, carry):
        # Clamp so padded rows of the last tile re-read a valid link (masked
        # out of the sum below) and SMEM / table indexing stays in bounds.
        r = jnp.minimum(base + j, m_links - 1)
        a = jnp.maximum(e1_ref[r], 0)
        b = jnp.maximum(e2_ref[r], 0)
        for t in range(n_tables):
            at = jnp.minimum(a, table_rows[t] - 1)
            bt = jnp.minimum(b, table_rows[t] - 1)
            gath_refs[2 * t][j, :] = table_refs[t][at, :]
            gath_refs[2 * t + 1][j, :] = table_refs[t][bt, :]
        return carry

    lax.fori_loop(0, tm, gather_one, 0)

    pairs = [(gath_refs[2 * t][...].astype(jnp.float32),
              gath_refs[2 * t + 1][...].astype(jnp.float32))
             for t in range(n_tables)]
    per_link = _tile_loss(pairs, knowledge_weight)

    row = base + lax.broadcasted_iota(jnp.int32, (tm, 1), 0)
    per_link = jnp.where(row < m_links, per_link, 0.0)   # select, not multiply
    acc_ref[...] += jnp.sum(per_link, axis=0, keepdims=True)

    @pl.when(i == n_inner - 1)
    def _finalize():
        out_ref[...] = acc_ref[...]


# ---------------------------------------------------------------------------
# Fallback kernel: streams pre-gathered (source-dtype, unpadded) link rows.
# ---------------------------------------------------------------------------
def _streaming_kernel(*refs, n_tables, tm, m_links, knowledge_weight):
    in_refs = refs[:2 * n_tables]
    out_ref = refs[2 * n_tables]
    acc_ref = refs[2 * n_tables + 1]

    i = pl.program_id(0)
    n = pl.num_programs(0)

    @pl.when(i == 0)
    def _init():
        acc_ref[...] = jnp.zeros_like(acc_ref)

    pairs = [(in_refs[2 * t][...].astype(jnp.float32),
              in_refs[2 * t + 1][...].astype(jnp.float32))
             for t in range(n_tables)]
    per_link = _tile_loss(pairs, knowledge_weight)

    row = i * tm + lax.broadcasted_iota(jnp.int32, (tm, 1), 0)
    per_link = jnp.where(row < m_links, per_link, 0.0)
    acc_ref[...] += jnp.sum(per_link, axis=0, keepdims=True)

    @pl.when(i == n - 1)
    def _finalize():
        out_ref[...] = acc_ref[...]


# ---------------------------------------------------------------------------
# Wrapper.
# ---------------------------------------------------------------------------
def knowledge_aware_clip_loss(img_emb, text_emb, entity_names, train_ill,
                              graph_emb=None, temperature=0.07,
                              knowledge_weight=0.1, force_streaming=False):
    """Pallas implementation of KnowledgeAwareCLIPLoss.forward.

    `temperature` is kept for API parity with the module but (as in the
    reference forward) is unused.
    """
    del temperature
    if img_emb is None or text_emb is None:
        return jnp.float32(0.0)

    train_ill = jnp.asarray(train_ill)
    M = int(train_ill.shape[0])
    if M == 0:
        return jnp.float32(0.0)

    tables = [jnp.asarray(img_emb), jnp.asarray(text_emb)]
    if entity_names is not None:
        tables.append(jnp.asarray(entity_names))
    if graph_emb is not None:
        tables.append(jnp.asarray(graph_emb))
    n_tables = len(tables)

    e1 = train_ill[:, 0].astype(jnp.int32)
    e2 = train_ill[:, 1].astype(jnp.int32)

    loss_count = M * (n_tables - 1)          # alignment + one per optional table
    inv_count = 1.0 / float(max(loss_count, 1))

    max_d = max(int(t.shape[1]) for t in tables)
    row_align = 16 if any(t.dtype.itemsize < 4 for t in tables) else 8
    table_bytes = sum(2 * int(t.shape[0]) * int(t.shape[1]) * t.dtype.itemsize
                      for t in tables)       # x2: conservative double-buffer
    cost = pl.CostEstimate(
        flops=int(loss_count * 8 * max_d + 1),
        transcendentals=int(loss_count * 3 + 1),
        bytes_accessed=int(table_bytes // 2 + 8 * M + 8))

    resident = (not force_streaming) and (table_bytes <= _TABLE_BUDGET)

    if resident:
        # ---- fused-gather path: tables resident in VMEM, indices in SMEM ----
        per_row_bytes = sum(2 * int(t.shape[1]) * (t.dtype.itemsize + 8)
                            for t in tables)  # gather scratch + f32 working set
        tm_cap = max(row_align,
                     (_TILE_BUDGET // per_row_bytes) // row_align * row_align)
        TM = int(min(512, tm_cap, _round_up(M, row_align)))
        tiles_total = int(pl.cdiv(M, TM))
        splits = 2 if tiles_total >= 2 else 1   # 2 TCs on v7x; harmless elsewhere
        tiles_per_split = int(pl.cdiv(tiles_total, splits))

        kernel = functools.partial(
            _resident_kernel,
            n_tables=n_tables,
            table_rows=tuple(int(t.shape[0]) for t in tables),
            tm=TM, m_links=M, tiles_per_split=tiles_per_split,
            knowledge_weight=float(knowledge_weight))

        table_specs = [pl.BlockSpec(tuple(int(s) for s in t.shape),
                                    lambda c, i, e1r, e2r: (0, 0))
                       for t in tables]
        gather_scratch = []
        for t in tables:
            gather_scratch += [pltpu.VMEM((TM, int(t.shape[1])), t.dtype)] * 2

        vmem_limit = int(min(_VMEM_CAP,
                             max(32 * 1024 * 1024,
                                 table_bytes + TM * per_row_bytes
                                 + 8 * 1024 * 1024)))

        partial_sums = pl.pallas_call(
            kernel,
            out_shape=jax.ShapeDtypeStruct((splits, 1), jnp.float32),
            grid_spec=pltpu.PrefetchScalarGridSpec(
                num_scalar_prefetch=2,
                grid=(splits, tiles_per_split),
                in_specs=table_specs,
                out_specs=pl.BlockSpec((1, 1), lambda c, i, e1r, e2r: (c, 0)),
                scratch_shapes=[pltpu.VMEM((1, 1), jnp.float32)] + gather_scratch),
            compiler_params=pltpu.CompilerParams(
                dimension_semantics=("parallel", "arbitrary"),
                vmem_limit_bytes=vmem_limit),
            cost_estimate=cost,
        )(e1, e2, *tables)
        return jnp.sum(partial_sums) * inv_count

    # ---- fallback: JAX-side row gather, streamed unpadded in source dtype ----
    # TODO(synk): replace this with a per-tile manual DMA row-gather (tables in
    # pl.ANY + make_async_copy per row, P4 double-buffering) so the gathered
    # copies never touch HBM when the tables exceed the VMEM budget.
    gathered = []
    for t in tables:
        gathered += [t[e1], t[e2]]

    per_row_bytes = sum(4 * int(t.shape[1]) * (t.dtype.itemsize + 4)
                        for t in tables)     # double-buffered tiles + f32 work
    tm_cap = max(row_align,
                 (_TILE_BUDGET // per_row_bytes) // row_align * row_align)
    TM = int(min(512, tm_cap, _round_up(M, row_align)))
    n_tiles = int(pl.cdiv(M, TM))

    kernel = functools.partial(
        _streaming_kernel, n_tables=n_tables, tm=TM, m_links=M,
        knowledge_weight=float(knowledge_weight))

    in_specs = [pl.BlockSpec((TM, int(g.shape[1])), lambda i: (i, 0))
                for g in gathered]
    vmem_limit = int(min(_VMEM_CAP,
                         max(32 * 1024 * 1024,
                             TM * per_row_bytes + 8 * 1024 * 1024)))

    loss = pl.pallas_call(
        kernel,
        out_shape=jax.ShapeDtypeStruct((1, 1), jnp.float32),
        grid=(n_tiles,),
        in_specs=in_specs,
        out_specs=pl.BlockSpec((1, 1), lambda i: (0, 0)),
        scratch_shapes=[pltpu.VMEM((1, 1), jnp.float32)],
        compiler_params=pltpu.CompilerParams(
            dimension_semantics=("arbitrary",),
            vmem_limit_bytes=vmem_limit),
        cost_estimate=cost,
    )(*gathered)
    return loss[0, 0] * inv_count


# ---------------------------------------------------------------------------
# Pure-JAX reference mirroring the PyTorch forward (vectorized).
# ---------------------------------------------------------------------------
def _reference_loss(img_emb, text_emb, entity_names, train_ill, graph_emb=None,
                    knowledge_weight=0.1):
    e1 = train_ill[:, 0]
    e2 = train_ill[:, 1]

    def cos(x, y):
        nx = jnp.maximum(jnp.sqrt(jnp.sum(x * x, axis=-1)), _EPS)
        ny = jnp.maximum(jnp.sqrt(jnp.sum(y * y, axis=-1)), _EPS)
        return jnp.sum(x * y, axis=-1) / (nx * ny)

    it = cos(img_emb[e1], text_emb[e2])
    ckg = cos(img_emb[e1], img_emb[e2]) + cos(text_emb[e1], text_emb[e2])
    total = jnp.sum(-jnp.log(jax.nn.sigmoid(it + ckg)))
    count = int(e1.shape[0])
    if entity_names is not None:
        nsim = cos(entity_names[e1], entity_names[e2])
        total = total + knowledge_weight * jnp.sum(-jnp.log(jax.nn.sigmoid(nsim)))
        count += int(e1.shape[0])
    if graph_emb is not None:
        gsim = cos(graph_emb[e1], graph_emb[e2])
        total = total + knowledge_weight * jnp.sum(-jnp.log(jax.nn.sigmoid(gsim)))
        count += int(e1.shape[0])
    return total / max(count, 1)


if __name__ == "__main__":
    key = jax.random.PRNGKey(0)
    k1, k2, k3, k4, k5, k6 = jax.random.split(key, 6)

    N, D, M = 16, 32, 8     # N entities, feature dim D, M training links
    img_emb = jax.random.normal(k1, (N, D), dtype=jnp.float32)
    text_emb = jax.random.normal(k2, (N, D), dtype=jnp.float32)
    entity_names = jax.random.normal(k3, (N, D), dtype=jnp.float32)
    graph_emb = jax.random.normal(k4, (N, D), dtype=jnp.float32)
    train_ill = jnp.stack(
        [jax.random.permutation(k5, N)[:M],
         jax.random.permutation(k6, N)[:M]],
        axis=1,
    ).astype(jnp.int32)     # [M, 2]

    # 1) Primary fused-gather (resident-table) path, all optional inputs.
    loss = knowledge_aware_clip_loss(img_emb, text_emb, entity_names,
                                     train_ill, graph_emb)
    loss = jax.block_until_ready(loss)
    ref = _reference_loss(img_emb, text_emb, entity_names, train_ill, graph_emb)
    assert jnp.allclose(loss, ref, atol=1e-4, rtol=1e-4), (loss, ref)

    # 2) Optional-input path (graph_emb=None), as supported by the module.
    loss2 = knowledge_aware_clip_loss(img_emb, text_emb, entity_names,
                                      train_ill, None)
    loss2 = jax.block_until_ready(loss2)
    ref2 = _reference_loss(img_emb, text_emb, entity_names, train_ill, None)
    assert jnp.allclose(loss2, ref2, atol=1e-4, rtol=1e-4), (loss2, ref2)

    # 3) Streaming fallback path (used when tables exceed the VMEM budget).
    loss3 = knowledge_aware_clip_loss(img_emb, text_emb, entity_names,
                                      train_ill, graph_emb, force_streaming=True)
    loss3 = jax.block_until_ready(loss3)
    assert jnp.allclose(loss3, ref, atol=1e-4, rtol=1e-4), (loss3, ref)

    print("KERNEL_OK")
</pallas_src>

<mosaic_0001>
module attributes {stable_mosaic.version = 11 : i64} {
  func.func @_resident_kernel(%arg0: i32, %arg1: i32, %arg2: memref<8xi32, #tpu.memory_space<smem>>, %arg3: memref<8xi32, #tpu.memory_space<smem>>, %arg4: memref<16x32xf32, #tpu.memory_space<vmem>>, %arg5: memref<16x32xf32, #tpu.memory_space<vmem>>, %arg6: memref<16x32xf32, #tpu.memory_space<vmem>>, %arg7: memref<16x32xf32, #tpu.memory_space<vmem>>, %arg8: memref<1x1xf32, #tpu.memory_space<vmem>>, %arg9: memref<1x1xf32, #tpu.memory_space<vmem>>, %arg10: memref<8x32xf32, #tpu.memory_space<vmem>>, %arg11: memref<8x32xf32, #tpu.memory_space<vmem>>, %arg12: memref<8x32xf32, #tpu.memory_space<vmem>>, %arg13: memref<8x32xf32, #tpu.memory_space<vmem>>, %arg14: memref<8x32xf32, #tpu.memory_space<vmem>>, %arg15: memref<8x32xf32, #tpu.memory_space<vmem>>, %arg16: memref<8x32xf32, #tpu.memory_space<vmem>>, %arg17: memref<8x32xf32, #tpu.memory_space<vmem>>) attributes {dimension_semantics = [#tpu.dimension_semantics<parallel>, #tpu.dimension_semantics<arbitrary>], iteration_bounds = array<i64: 1, 1>, scalar_prefetch = 2 : i64, scratch_operands = 9 : i64, tpu.core_type = #tpu.core_type<tc>, window_params = [{pipeline_mode = #tpu.pipeline_mode<synchronous>, transform_indices = @transform_0, window_bounds = array<i64: 16, 32>}, {pipeline_mode = #tpu.pipeline_mode<synchronous>, transform_indices = @transform_1, window_bounds = array<i64: 16, 32>}, {pipeline_mode = #tpu.pipeline_mode<synchronous>, transform_indices = @transform_2, window_bounds = array<i64: 16, 32>}, {pipeline_mode = #tpu.pipeline_mode<synchronous>, transform_indices = @transform_3, window_bounds = array<i64: 16, 32>}, {transform_indices = @transform_4, window_bounds = array<i64: 1, 1>}]} {
    %c1_i32 = arith.constant 1 : i32
    %0 = arith.muli %arg0, %c1_i32 : i32
    %1 = arith.addi %0, %arg1 : i32
    %c8_i32 = arith.constant 8 : i32
    %2 = arith.muli %1, %c8_i32 : i32
    %c0_i32 = arith.constant 0 : i32
    %3 = arith.cmpi eq, %arg1, %c0_i32 : i32
    %4 = arith.extui %3 : i1 to i32
    %c0_i32_0 = arith.constant 0 : i32
    %5 = arith.cmpi ne, %4, %c0_i32_0 : i32
    scf.if %5 {
      %cst_60 = arith.constant 0.000000e+00 : f32
      %141 = vector.broadcast %cst_60 : f32 to vector<1x1xf32>
      %c0_61 = arith.constant 0 : index
      %c0_62 = arith.constant 0 : index
      %142 = vector.load %arg9[%c0_61, %c0_62] : memref<1x1xf32, #tpu.memory_space<vmem>>, vector<1x1xf32>
      tpu.vector_store %arg9[%c0_61, %c0_62], %141 {strides = array<i32>} : memref<1x1xf32, #tpu.memory_space<vmem>>, vector<1x1xf32>,
    } else {
    }
    %c0_i32_1 = arith.constant 0 : i32
    %c8_i32_2 = arith.constant 8 : i32
    %6 = arith.addi %c0_i32_1, %c8_i32_2 : i32
    %c1_i32_3 = arith.constant 1 : i32
    scf.for %arg18 = %c0_i32_1 to %6 step %c1_i32_3  : i32 {
      %141 = arith.addi %2, %arg18 : i32
      %c7_i32 = arith.constant 7 : i32
      %142 = arith.minsi %141, %c7_i32 : i32
      %143 = arith.index_cast %142 : i32 to index
      %144 = memref.load %arg2[%143] : memref<8xi32, #tpu.memory_space<smem>>
      %c0_i32_60 = arith.constant 0 : i32
      %145 = arith.maxsi %144, %c0_i32_60 : i32
      %146 = arith.index_cast %142 : i32 to index
      %147 = memref.load %arg3[%146] : memref<8xi32, #tpu.memory_space<smem>>
      %c0_i32_61 = arith.constant 0 : i32
      %148 = arith.maxsi %147, %c0_i32_61 : i32
      %c15_i32 = arith.constant 15 : i32
      %149 = arith.minsi %145, %c15_i32 : i32
      %c15_i32_62 = arith.constant 15 : i32
      %150 = arith.minsi %148, %c15_i32_62 : i32
      %151 = arith.index_cast %149 : i32 to index
      %c0_63 = arith.constant 0 : index
      %152 = vector.load %arg4[%151, %c0_63] : memref<16x32xf32, #tpu.memory_space<vmem>>, vector<1x32xf32>
      %153 = vector.shape_cast %152 : vector<1x32xf32> to vector<32xf32>
      %154 = arith.index_cast %arg18 : i32 to index
      %c0_64 = arith.constant 0 : index
      %155 = vector.load %arg10[%154, %c0_64] : memref<8x32xf32, #tpu.memory_space<vmem>>, vector<1x32xf32>
      %156 = vector.shape_cast %155 : vector<1x32xf32> to vector<32xf32>
      %157 = vector.shape_cast %153 : vector<32xf32> to vector<1x32xf32>
      tpu.vector_store %arg10[%154, %c0_64], %157 {strides = array<i32>} : memref<8x32xf32, #tpu.memory_space<vmem>>, vector<1x32xf32>,
      %158 = arith.index_cast %150 : i32 to index
      %c0_65 = arith.constant 0 : index
      %159 = vector.load %arg4[%158, %c0_65] : memref<16x32xf32, #tpu.memory_space<vmem>>, vector<1x32xf32>
      %160 = vector.shape_cast %159 : vector<1x32xf32> to vector<32xf32>
      %161 = arith.index_cast %arg18 : i32 to index
      %c0_66 = arith.constant 0 : index
      %162 = vector.load %arg11[%161, %c0_66] : memref<8x32xf32, #tpu.memory_space<vmem>>, vector<1x32xf32>
      %163 = vector.shape_cast %162 : vector<1x32xf32> to vector<32xf32>
      %164 = vector.shape_cast %160 : vector<32xf32> to vector<1x32xf32>
      tpu.vector_store %arg11[%161, %c0_66], %164 {strides = array<i32>} : memref<8x32xf32, #tpu.memory_space<vmem>>, vector<1x32xf32>,
      %c15_i32_67 = arith.constant 15 : i32
      %165 = arith.minsi %145, %c15_i32_67 : i32
      %c15_i32_68 = arith.constant 15 : i32
      %166 = arith.minsi %148, %c15_i32_68 : i32
      %167 = arith.index_cast %165 : i32 to index
      %c0_69 = arith.constant 0 : index
      %168 = vector.load %arg5[%167, %c0_69] : memref<16x32xf32, #tpu.memory_space<vmem>>, vector<1x32xf32>
      %169 = vector.shape_cast %168 : vector<1x32xf32> to vector<32xf32>
      %170 = arith.index_cast %arg18 : i32 to index
      %c0_70 = arith.constant 0 : index
      %171 = vector.load %arg12[%170, %c0_70] : memref<8x32xf32, #tpu.memory_space<vmem>>, vector<1x32xf32>
      %172 = vector.shape_cast %171 : vector<1x32xf32> to vector<32xf32>
      %173 = vector.shape_cast %169 : vector<32xf32> to vector<1x32xf32>
      tpu.vector_store %arg12[%170, %c0_70], %173 {strides = array<i32>} : memref<8x32xf32, #tpu.memory_space<vmem>>, vector<1x32xf32>,
      %174 = arith.index_cast %166 : i32 to index
      %c0_71 = arith.constant 0 : index
      %175 = vector.load %arg5[%174, %c0_71] : memref<16x32xf32, #tpu.memory_space<vmem>>, vector<1x32xf32>
      %176 = vector.shape_cast %175 : vector<1x32xf32> to vector<32xf32>
      %177 = arith.index_cast %arg18 : i32 to index
      %c0_72 = arith.constant 0 : index
      %178 = vector.load %arg13[%177, %c0_72] : memref<8x32xf32, #tpu.memory_space<vmem>>, vector<1x32xf32>
      %179 = vector.shape_cast %178 : vector<1x32xf32> to vector<32xf32>
      %180 = vector.shape_cast %176 : vector<32xf32> to vector<1x32xf32>
      tpu.vector_store %arg13[%177, %c0_72], %180 {strides = array<i32>} : memref<8x32xf32, #tpu.memory_space<vmem>>, vector<1x32xf32>,
      %c15_i32_73 = arith.constant 15 : i32
      %181 = arith.minsi %145, %c15_i32_73 : i32
      %c15_i32_74 = arith.constant 15 : i32
      %182 = arith.minsi %148, %c15_i32_74 : i32
      %183 = arith.index_cast %181 : i32 to index
      %c0_75 = arith.constant 0 : index
      %184 = vector.load %arg6[%183, %c0_75] : memref<16x32xf32, #tpu.memory_space<vmem>>, vector<1x32xf32>
      %185 = vector.shape_cast %184 : vector<1x32xf32> to vector<32xf32>
      %186 = arith.index_cast %arg18 : i32 to index
      %c0_76 = arith.constant 0 : index
      %187 = vector.load %arg14[%186, %c0_76] : memref<8x32xf32, #tpu.memory_space<vmem>>, vector<1x32xf32>
      %188 = vector.shape_cast %187 : vector<1x32xf32> to vector<32xf32>
      %189 = vector.shape_cast %185 : vector<32xf32> to vector<1x32xf32>
      tpu.vector_store %arg14[%186, %c0_76], %189 {strides = array<i32>} : memref<8x32xf32, #tpu.memory_space<vmem>>, vector<1x32xf32>,
      %190 = arith.index_cast %182 : i32 to index
      %c0_77 = arith.constant 0 : index
      %191 = vector.load %arg6[%190, %c0_77] : memref<16x32xf32, #tpu.memory_space<vmem>>, vector<1x32xf32>
      %192 = vector.shape_cast %191 : vector<1x32xf32> to vector<32xf32>
      %193 = arith.index_cast %arg18 : i32 to index
      %c0_78 = arith.constant 0 : index
      %194 = vector.load %arg15[%193, %c0_78] : memref<8x32xf32, #tpu.memory_space<vmem>>, vector<1x32xf32>
      %195 = vector.shape_cast %194 : vector<1x32xf32> to vector<32xf32>
      %196 = vector.shape_cast %192 : vector<32xf32> to vector<1x32xf32>
      tpu.vector_store %arg15[%193, %c0_78], %196 {strides = array<i32>} : memref<8x32xf32, #tpu.memory_space<vmem>>, vector<1x32xf32>,
      %c15_i32_79 = arith.constant 15 : i32
      %197 = arith.minsi %145, %c15_i32_79 : i32
      %c15_i32_80 = arith.constant 15 : i32
      %198 = arith.minsi %148, %c15_i32_80 : i32
      %199 = arith.index_cast %197 : i32 to index
      %c0_81 = arith.constant 0 : index
      %200 = vector.load %arg7[%199, %c0_81] : memref<16x32xf32, #tpu.memory_space<vmem>>, vector<1x32xf32>
      %201 = vector.shape_cast %200 : vector<1x32xf32> to vector<32xf32>
      %202 = arith.index_cast %arg18 : i32 to index
      %c0_82 = arith.constant 0 : index
      %203 = vector.load %arg16[%202, %c0_82] : memref<8x32xf32, #tpu.memory_space<vmem>>, vector<1x32xf32>
      %204 = vector.shape_cast %203 : vector<1x32xf32> to vector<32xf32>
      %205 = vector.shape_cast %201 : vector<32xf32> to vector<1x32xf32>
      tpu.vector_store %arg16[%202, %c0_82], %205 {strides = array<i32>} : memref<8x32xf32, #tpu.memory_space<vmem>>, vector<1x32xf32>,
      %206 = arith.index_cast %198 : i32 to index
      %c0_83 = arith.constant 0 : index
      %207 = vector.load %arg7[%206, %c0_83] : memref<16x32xf32, #tpu.memory_space<vmem>>, vector<1x32xf32>
      %208 = vector.shape_cast %207 : vector<1x32xf32> to vector<32xf32>
      %209 = arith.index_cast %arg18 : i32 to index
      %c0_84 = arith.constant 0 : index
      %210 = vector.load %arg17[%209, %c0_84] : memref<8x32xf32, #tpu.memory_space<vmem>>, vector<1x32xf32>
      %211 = vector.shape_cast %210 : vector<1x32xf32> to vector<32xf32>
      %212 = vector.shape_cast %208 : vector<32xf32> to vector<1x32xf32>
      tpu.vector_store %arg17[%209, %c0_84], %212 {strides = array<i32>} : memref<8x32xf32, #tpu.memory_space<vmem>>, vector<1x32xf32>,
    }
    %c8_i32_4 = arith.constant 8 : i32
    %c0 = arith.constant 0 : index
    %c0_5 = arith.constant 0 : index
    %7 = vector.load %arg10[%c0, %c0_5] : memref<8x32xf32, #tpu.memory_space<vmem>>, vector<8x32xf32>
    %c0_6 = arith.constant 0 : index
    %c0_7 = arith.constant 0 : index
    %8 = vector.load %arg11[%c0_6, %c0_7] : memref<8x32xf32, #tpu.memory_space<vmem>>, vector<8x32xf32>
    %c0_8 = arith.constant 0 : index
    %c0_9 = arith.constant 0 : index
    %9 = vector.load %arg12[%c0_8, %c0_9] : memref<8x32xf32, #tpu.memory_space<vmem>>, vector<8x32xf32>
    %c0_10 = arith.constant 0 : index
    %c0_11 = arith.constant 0 : index
    %10 = vector.load %arg13[%c0_10, %c0_11] : memref<8x32xf32, #tpu.memory_space<vmem>>, vector<8x32xf32>
    %c0_12 = arith.constant 0 : index
    %c0_13 = arith.constant 0 : index
    %11 = vector.load %arg14[%c0_12, %c0_13] : memref<8x32xf32, #tpu.memory_space<vmem>>, vector<8x32xf32>
    %c0_14 = arith.constant 0 : index
    %c0_15 = arith.constant 0 : index
    %12 = vector.load %arg15[%c0_14, %c0_15] : memref<8x32xf32, #tpu.memory_space<vmem>>, vector<8x32xf32>
    %c0_16 = arith.constant 0 : index
    %c0_17 = arith.constant 0 : index
    %13 = vector.load %arg16[%c0_16, %c0_17] : memref<8x32xf32, #tpu.memory_space<vmem>>, vector<8x32xf32>
    %c0_18 = arith.constant 0 : index
    %c0_19 = arith.constant 0 : index
    %14 = vector.load %arg17[%c0_18, %c0_19] : memref<8x32xf32, #tpu.memory_space<vmem>>, vector<8x32xf32>
    %15 = arith.mulf %7, %7 : vector<8x32xf32>
    %cst = arith.constant dense<0.000000e+00> : vector<8xf32>
    %16 = vector.multi_reduction <add>, %15, %cst [1] : vector<8x32xf32> to vector<8xf32>
    %17 = vector.shape_cast %16 : vector<8xf32> to vector<8x1xf32>
    %cst_20 = arith.constant 1.000000e-16 : f32
    %18 = vector.broadcast %cst_20 : f32 to vector<8x1xf32>
    %19 = arith.maximumf %17, %18 : vector<8x1xf32>
    %20 = math.rsqrt %19 : vector<8x1xf32>
    %21 = arith.mulf %8, %8 : vector<8x32xf32>
    %cst_21 = arith.constant dense<0.000000e+00> : vector<8xf32>
    %22 = vector.multi_reduction <add>, %21, %cst_21 [1] : vector<8x32xf32> to vector<8xf32>
    %23 = vector.shape_cast %22 : vector<8xf32> to vector<8x1xf32>
    %cst_22 = arith.constant 1.000000e-16 : f32
    %24 = vector.broadcast %cst_22 : f32 to vector<8x1xf32>
    %25 = arith.maximumf %23, %24 : vector<8x1xf32>
    %26 = math.rsqrt %25 : vector<8x1xf32>
    %27 = arith.mulf %9, %9 : vector<8x32xf32>
    %cst_23 = arith.constant dense<0.000000e+00> : vector<8xf32>
    %28 = vector.multi_reduction <add>, %27, %cst_23 [1] : vector<8x32xf32> to vector<8xf32>
    %29 = vector.shape_cast %28 : vector<8xf32> to vector<8x1xf32>
    %cst_24 = arith.constant 1.000000e-16 : f32
    %30 = vector.broadcast %cst_24 : f32 to vector<8x1xf32>
    %31 = arith.maximumf %29, %30 : vector<8x1xf32>
    %32 = math.rsqrt %31 : vector<8x1xf32>
    %33 = arith.mulf %10, %10 : vector<8x32xf32>
    %cst_25 = arith.constant dense<0.000000e+00> : vector<8xf32>
    %34 = vector.multi_reduction <add>, %33, %cst_25 [1] : vector<8x32xf32> to vector<8xf32>
    %35 = vector.shape_cast %34 : vector<8xf32> to vector<8x1xf32>
    %cst_26 = arith.constant 1.000000e-16 : f32
    %36 = vector.broadcast %cst_26 : f32 to vector<8x1xf32>
    %37 = arith.maximumf %35, %36 : vector<8x1xf32>
    %38 = math.rsqrt %37 : vector<8x1xf32>
    %39 = arith.mulf %7, %10 : vector<8x32xf32>
    %cst_27 = arith.constant dense<0.000000e+00> : vector<8xf32>
    %40 = vector.multi_reduction <add>, %39, %cst_27 [1] : vector<8x32xf32> to vector<8xf32>
    %41 = vector.shape_cast %40 : vector<8xf32> to vector<8x1xf32>
    %42 = arith.mulf %20, %38 : vector<8x1xf32>
    %43 = arith.mulf %41, %42 : vector<8x1xf32>
    %44 = arith.mulf %7, %8 : vector<8x32xf32>
    %cst_28 = arith.constant dense<0.000000e+00> : vector<8xf32>
    %45 = vector.multi_reduction <add>, %44, %cst_28 [1] : vector<8x32xf32> to vector<8xf32>
    %46 = vector.shape_cast %45 : vector<8xf32> to vector<8x1xf32>
    %47 = arith.mulf %20, %26 : vector<8x1xf32>
    %48 = arith.mulf %46, %47 : vector<8x1xf32>
    %49 = arith.addf %43, %48 : vector<8x1xf32>
    %50 = arith.mulf %9, %10 : vector<8x32xf32>
    %cst_29 = arith.constant dense<0.000000e+00> : vector<8xf32>
    %51 = vector.multi_reduction <add>, %50, %cst_29 [1] : vector<8x32xf32> to vector<8xf32>
    %52 = vector.shape_cast %51 : vector<8xf32> to vector<8x1xf32>
    %53 = arith.mulf %32, %38 : vector<8x1xf32>
    %54 = arith.mulf %52, %53 : vector<8x1xf32>
    %55 = arith.addf %49, %54 : vector<8x1xf32>
    %cst_30 = arith.constant 0.000000e+00 : f32
    %56 = vector.broadcast %cst_30 : f32 to vector<8x1xf32>
    %57 = arith.subf %56, %55 : vector<8x1xf32>
    %cst_31 = arith.constant 0.000000e+00 : f32
    %58 = vector.broadcast %cst_31 : f32 to vector<8x1xf32>
    %59 = arith.maximumf %57, %58 : vector<8x1xf32>
    %60 = math.absf %55 : vector<8x1xf32>
    %cst_32 = arith.constant 0.000000e+00 : f32
    %61 = vector.broadcast %cst_32 : f32 to vector<8x1xf32>
    %62 = arith.subf %61, %60 : vector<8x1xf32>
    %63 = math.exp %62 : vector<8x1xf32>
    %64 = math.log1p %63 : vector<8x1xf32>
    %65 = arith.addf %59, %64 : vector<8x1xf32>
    %66 = arith.mulf %11, %12 : vector<8x32xf32>
    %cst_33 = arith.constant dense<0.000000e+00> : vector<8xf32>
    %67 = vector.multi_reduction <add>, %66, %cst_33 [1] : vector<8x32xf32> to vector<8xf32>
    %68 = vector.shape_cast %67 : vector<8xf32> to vector<8x1xf32>
    %69 = arith.mulf %11, %11 : vector<8x32xf32>
    %cst_34 = arith.constant dense<0.000000e+00> : vector<8xf32>
    %70 = vector.multi_reduction <add>, %69, %cst_34 [1] : vector<8x32xf32> to vector<8xf32>
    %71 = vector.shape_cast %70 : vector<8xf32> to vector<8x1xf32>
    %cst_35 = arith.constant 1.000000e-16 : f32
    %72 = vector.broadcast %cst_35 : f32 to vector<8x1xf32>
    %73 = arith.maximumf %71, %72 : vector<8x1xf32>
    %74 = math.rsqrt %73 : vector<8x1xf32>
    %75 = arith.mulf %12, %12 : vector<8x32xf32>
    %cst_36 = arith.constant dense<0.000000e+00> : vector<8xf32>
    %76 = vector.multi_reduction <add>, %75, %cst_36 [1] : vector<8x32xf32> to vector<8xf32>
    %77 = vector.shape_cast %76 : vector<8xf32> to vector<8x1xf32>
    %cst_37 = arith.constant 1.000000e-16 : f32
    %78 = vector.broadcast %cst_37 : f32 to vector<8x1xf32>
    %79 = arith.maximumf %77, %78 : vector<8x1xf32>
    %80 = math.rsqrt %79 : vector<8x1xf32>
    %81 = arith.mulf %74, %80 : vector<8x1xf32>
    %82 = arith.mulf %68, %81 : vector<8x1xf32>
    %cst_38 = arith.constant 0.000000e+00 : f32
    %83 = vector.broadcast %cst_38 : f32 to vector<8x1xf32>
    %84 = arith.subf %83, %82 : vector<8x1xf32>
    %cst_39 = arith.constant 0.000000e+00 : f32
    %85 = vector.broadcast %cst_39 : f32 to vector<8x1xf32>
    %86 = arith.maximumf %84, %85 : vector<8x1xf32>
    %87 = math.absf %82 : vector<8x1xf32>
    %cst_40 = arith.constant 0.000000e+00 : f32
    %88 = vector.broadcast %cst_40 : f32 to vector<8x1xf32>
    %89 = arith.subf %88, %87 : vector<8x1xf32>
    %90 = math.exp %89 : vector<8x1xf32>
    %91 = math.log1p %90 : vector<8x1xf32>
    %92 = arith.addf %86, %91 : vector<8x1xf32>
    %cst_41 = arith.constant 1.000000e-01 : f32
    %93 = vector.broadcast %cst_41 : f32 to vector<8x1xf32>
    %94 = arith.mulf %93, %92 : vector<8x1xf32>
    %95 = arith.addf %65, %94 : vector<8x1xf32>
    %96 = arith.mulf %13, %14 : vector<8x32xf32>
    %cst_42 = arith.constant dense<0.000000e+00> : vector<8xf32>
    %97 = vector.multi_reduction <add>, %96, %cst_42 [1] : vector<8x32xf32> to vector<8xf32>
    %98 = vector.shape_cast %97 : vector<8xf32> to vector<8x1xf32>
    %99 = arith.mulf %13, %13 : vector<8x32xf32>
    %cst_43 = arith.constant dense<0.000000e+00> : vector<8xf32>
    %100 = vector.multi_reduction <add>, %99, %cst_43 [1] : vector<8x32xf32> to vector<8xf32>
    %101 = vector.shape_cast %100 : vector<8xf32> to vector<8x1xf32>
    %cst_44 = arith.constant 1.000000e-16 : f32
    %102 = vector.broadcast %cst_44 : f32 to vector<8x1xf32>
    %103 = arith.maximumf %101, %102 : vector<8x1xf32>
    %104 = math.rsqrt %103 : vector<8x1xf32>
    %105 = arith.mulf %14, %14 : vector<8x32xf32>
    %cst_45 = arith.constant dense<0.000000e+00> : vector<8xf32>
    %106 = vector.multi_reduction <add>, %105, %cst_45 [1] : vector<8x32xf32> to vector<8xf32>
    %107 = vector.shape_cast %106 : vector<8xf32> to vector<8x1xf32>
    %cst_46 = arith.constant 1.000000e-16 : f32
    %108 = vector.broadcast %cst_46 : f32 to vector<8x1xf32>
    %109 = arith.maximumf %107, %108 : vector<8x1xf32>
    %110 = math.rsqrt %109 : vector<8x1xf32>
    %111 = arith.mulf %104, %110 : vector<8x1xf32>
    %112 = arith.mulf %98, %111 : vector<8x1xf32>
    %cst_47 = arith.constant 0.000000e+00 : f32
    %113 = vector.broadcast %cst_47 : f32 to vector<8x1xf32>
    %114 = arith.subf %113, %112 : vector<8x1xf32>
    %cst_48 = arith.constant 0.000000e+00 : f32
    %115 = vector.broadcast %cst_48 : f32 to vector<8x1xf32>
    %116 = arith.maximumf %114, %115 : vector<8x1xf32>
    %117 = math.absf %112 : vector<8x1xf32>
    %cst_49 = arith.constant 0.000000e+00 : f32
    %118 = vector.broadcast %cst_49 : f32 to vector<8x1xf32>
    %119 = arith.subf %118, %117 : vector<8x1xf32>
    %120 = math.exp %119 : vector<8x1xf32>
    %121 = math.log1p %120 : vector<8x1xf32>
    %122 = arith.addf %116, %121 : vector<8x1xf32>
    %cst_50 = arith.constant 1.000000e-01 : f32
    %123 = vector.broadcast %cst_50 : f32 to vector<8x1xf32>
    %124 = arith.mulf %123, %122 : vector<8x1xf32>
    %125 = arith.addf %95, %124 : vector<8x1xf32>
    %126 = tpu.iota {dimensions = array<i32: 0>} : vector<8x1xi32>
    %127 = vector.broadcast %2 : i32 to vector<8x1xi32>
    %128 = arith.addi %127, %126 : vector<8x1xi32>
    %c8_i32_51 = arith.constant 8 : i32
    %129 = vector.broadcast %c8_i32_51 : i32 to vector<8x1xi32>
    %130 = arith.cmpi slt, %128, %129 : vector<8x1xi32>
    %cst_52 = arith.constant 0.000000e+00 : f32
    %131 = vector.broadcast %cst_52 : f32 to vector<8x1xf32>
    %132 = arith.select %130, %125, %131 : vector<8x1xi1>, vector<8x1xf32>
    %c0_53 = arith.constant 0 : index
    %c0_54 = arith.constant 0 : index
    %133 = vector.load %arg9[%c0_53, %c0_54] : memref<1x1xf32, #tpu.memory_space<vmem>>, vector<1x1xf32>
    %cst_55 = arith.constant dense<0.000000e+00> : vector<1xf32>
    %134 = vector.multi_reduction <add>, %132, %cst_55 [0] : vector<8x1xf32> to vector<1xf32>
    %135 = vector.shape_cast %134 : vector<1xf32> to vector<1x1xf32>
    %136 = arith.addf %133, %135 : vector<1x1xf32>
    %c0_56 = arith.constant 0 : index
    %c0_57 = arith.constant 0 : index
    %137 = vector.load %arg9[%c0_56, %c0_57] : memref<1x1xf32, #tpu.memory_space<vmem>>, vector<1x1xf32>
    tpu.vector_store %arg9[%c0_56, %c0_57], %136 {strides = array<i32>} : memref<1x1xf32, #tpu.memory_space<vmem>>, vector<1x1xf32>,
    %c0_i32_58 = arith.constant 0 : i32
    %138 = arith.cmpi eq, %arg1, %c0_i32_58 : i32
    %139 = arith.extui %138 : i1 to i32
    %c0_i32_59 = arith.constant 0 : i32
    %140 = arith.cmpi ne, %139, %c0_i32_59 : i32
    scf.if %140 {
      %c0_60 = arith.constant 0 : index
      %c0_61 = arith.constant 0 : index
      %141 = vector.load %arg9[%c0_60, %c0_61] : memref<1x1xf32, #tpu.memory_space<vmem>>, vector<1x1xf32>
      %c0_62 = arith.constant 0 : index
      %c0_63 = arith.constant 0 : index
      %142 = vector.load %arg8[%c0_62, %c0_63] : memref<1x1xf32, #tpu.memory_space<vmem>>, vector<1x1xf32>
      tpu.vector_store %arg8[%c0_62, %c0_63], %141 {strides = array<i32>} : memref<1x1xf32, #tpu.memory_space<vmem>>, vector<1x1xf32>,
    } else {
    }
    return
  }
  func.func @transform_0(%arg0: i32, %arg1: i32, %arg2: memref<8xi32, #tpu.memory_space<smem>>, %arg3: memref<8xi32, #tpu.memory_space<smem>>) -> (i32, i32) {
    %c0_i32 = arith.constant 0 : i32
    %c0_i32_0 = arith.constant 0 : i32
    %c0_i32_1 = arith.constant 0 : i32
    return %c0_i32, %c0_i32_0 : i32, i32
  }
  func.func @transform_1(%arg0: i32, %arg1: i32, %arg2: memref<8xi32, #tpu.memory_space<smem>>, %arg3: memref<8xi32, #tpu.memory_space<smem>>) -> (i32, i32) {
    %c0_i32 = arith.constant 0 : i32
    %c0_i32_0 = arith.constant 0 : i32
    %c0_i32_1 = arith.constant 0 : i32
    return %c0_i32, %c0_i32_0 : i32, i32
  }
  func.func @transform_2(%arg0: i32, %arg1: i32, %arg2: memref<8xi32, #tpu.memory_space<smem>>, %arg3: memref<8xi32, #tpu.memory_space<smem>>) -> (i32, i32) {
    %c0_i32 = arith.constant 0 : i32
    %c0_i32_0 = arith.constant 0 : i32
    %c0_i32_1 = arith.constant 0 : i32
    return %c0_i32, %c0_i32_0 : i32, i32
  }
  func.func @transform_3(%arg0: i32, %arg1: i32, %arg2: memref<8xi32, #tpu.memory_space<smem>>, %arg3: memref<8xi32, #tpu.memory_space<smem>>) -> (i32, i32) {
    %c0_i32 = arith.constant 0 : i32
    %c0_i32_0 = arith.constant 0 : i32
    %c0_i32_1 = arith.constant 0 : i32
    return %c0_i32, %c0_i32_0 : i32, i32
  }
  func.func @transform_4(%arg0: i32, %arg1: i32, %arg2: memref<8xi32, #tpu.memory_space<smem>>, %arg3: memref<8xi32, #tpu.memory_space<smem>>) -> (i32, i32) {
    %c0_i32 = arith.constant 0 : i32
    %c0_i32_0 = arith.constant 0 : i32
    return %arg0, %c0_i32 : i32, i32
  }
}

</mosaic_0001>

<llo_original>
// kernel: tpu_custom_call.1
$region0: #{tpu_custom_call.1}
  #allocation0 [shape = 'u32[]', space=smem, size = 0x4, offset = 0x4, fixed_abs, tag = 'smem constant byte address 0x4 - core index']
  #allocation1 [shape = 'u32[144,128]{1,0:T(1,128)}', space=vmem, size = 0x12000, scoped, tag = 'internal scratch']
  #allocation2 [shape = 'f32[1,1]{1,0:T(1,128)}', space=vmem, size = 0x200, scoped, tag = 'scratch operand']
  #allocation3 [shape = 'f32[8,32]{1,0:T(8,128)}', space=vmem, size = 0x1000, scoped, tag = 'scratch operand']
  #allocation4 [shape = 'f32[8,32]{1,0:T(8,128)}', space=vmem, size = 0x1000, scoped, tag = 'scratch operand']
  #allocation5 [shape = 'f32[8,32]{1,0:T(8,128)}', space=vmem, size = 0x1000, scoped, tag = 'scratch operand']
  #allocation6 [shape = 'f32[8,32]{1,0:T(8,128)}', space=vmem, size = 0x1000, scoped, tag = 'scratch operand']
  #allocation7 [shape = 'f32[8,32]{1,0:T(8,128)}', space=vmem, size = 0x1000, scoped, tag = 'scratch operand']
  #allocation8 [shape = 'f32[8,32]{1,0:T(8,128)}', space=vmem, size = 0x1000, scoped, tag = 'scratch operand']
  #allocation9 [shape = 'f32[8,32]{1,0:T(8,128)}', space=vmem, size = 0x1000, scoped, tag = 'scratch operand']
  #allocation10 [shape = 'f32[8,32]{1,0:T(8,128)}', space=vmem, size = 0x1000, scoped, tag = 'scratch operand']
  #allocation11 [shape = 's32[1]{0}', space=sflag, size = 0x4, scoped, tag = 'scoped memory for tpu_custom_call.1']
  #allocation12 [shape = 'u8[512]{0}', space=smem, size = 0x200, scoped, tag = 'prefetched SMEM operand 0']
  #allocation13 [shape = 'u8[512]{0}', space=smem, size = 0x200, scoped, tag = 'prefetched SMEM operand 1']
  %s0 = inlined_call_operand.hbm [shape: s32[8], index: 0, kind: input, shape index: {}]
  %s1 = inlined_call_operand.vmem [shape: s32[8], index: 1, kind: input, shape index: {}]
  %s2 = inlined_call_operand.hbm [shape: f32[16,32], index: 2, kind: input, shape index: {}]
  %s3 = inlined_call_operand.hbm [shape: f32[16,32], index: 3, kind: input, shape index: {}]
  %s4 = inlined_call_operand.hbm [shape: f32[16,32], index: 4, kind: input, shape index: {}]
  %s5 = inlined_call_operand.vmem [shape: f32[16,32], index: 5, kind: input, shape index: {}]
  %s6 = inlined_call_operand.hbm [shape: f32[1,1], index: 6, kind: output, shape index: {}]
  %s7 = sld [smem:[#allocation0]]
  $region53: #{tpu_custom_call.1} parent=0
    _
  %s9 = ssub.s32 1, %s7
  %s10 = scalar_select 0, %s9, %s7
  %12 = dma.hbm_to_smem %s0, 16, [#allocation12], [#allocation11]
  %s13 = sshll.u32 %s1, 4
  %s14 = int_to_ptr.vmem [resolvable:$true] %s13
  %16 = dma.vmem_to_smem %s14, 16, [#allocation13], [#allocation11]
  %17 = dma.done [#allocation11], 32
  %18 = sfence
  $region1: #{tpu_custom_call.1} parent=0
    #allocation14 [shape = 'u8[8192]{0}', space=vmem, size = 0x2000, scoped, tag = 'input window, operand 2, single buffered']
    #allocation15 [shape = 's32[1]{0}', space=sflag, size = 0x4, scoped, tag = 'scoped memory for tpu_custom_call.1']
    #allocation16 [shape = 's32[1]{0}', space=sflag, size = 0x4, scoped, tag = 'scoped memory for tpu_custom_call.1']
    #allocation17 [shape = 'u8[8192]{0}', space=vmem, size = 0x2000, scoped, tag = 'input window, operand 3, single buffered']
    #allocation18 [shape = 's32[1]{0}', space=sflag, size = 0x4, scoped, tag = 'scoped memory for tpu_custom_call.1']
    #allocation19 [shape = 'u8[8192]{0}', space=vmem, size = 0x2000, scoped, tag = 'input window, operand 4, single buffered']
    #allocation20 [shape = 'u8[512]{0}', space=vmem, size = 0x400, scoped, tag = 'output window, operand 0, single buffered']
    %19 = vsyncpa [#allocation15], 0
    %20 = vsyncpa [#allocation18], 0
    %21 = vsyncpa [#allocation16], 0
    // Predicated region
    $region2: #{tpu_custom_call.1} parent=1 // pred_check
      _
    $region3: #{tpu_custom_call.1} parent=1 // pred_check_branch
      %23 = sbr.rel (0) target = $region5
    $region4: #{tpu_custom_call.1} parent=1 // pred_region
      %s25 = ssub.s32 256, 256
      %26 = vsyncadd [#allocation15], %s25
      %s27 = sshll.u32 [#allocation14], 4
      %s28 = int_to_ptr.vmem [resolvable:$true] %s27
      %33 = dma.hbm_to_vmem [thread:$0]  %s2, 256, %s28, [#allocation15], 128, 128, 8
    $region5: #{tpu_custom_call.1} parent=1 // pred_fallthru
      _
    // Predicated region
    $region6: #{tpu_custom_call.1} parent=1 // pred_check
      _
    $region7: #{tpu_custom_call.1} parent=1 // pred_check_branch
      %35 = sbr.rel (0) target = $region9
    $region8: #{tpu_custom_call.1} parent=1 // pred_region
      %s37 = ssub.s32 256, 256
      %38 = vsyncadd [#allocation18], %s37
      %s39 = sshll.u32 [#allocation17], 4
      %s40 = int_to_ptr.vmem [resolvable:$true] %s39
      %45 = dma.hbm_to_vmem [thread:$0]  %s3, 256, %s40, [#allocation18], 128, 128, 8
    $region9: #{tpu_custom_call.1} parent=1 // pred_fallthru
      _
    // Predicated region
    $region10: #{tpu_custom_call.1} parent=1 // pred_check
      _
    $region11: #{tpu_custom_call.1} parent=1 // pred_check_branch
      %47 = sbr.rel (0) target = $region13
    $region12: #{tpu_custom_call.1} parent=1 // pred_region
      %s49 = ssub.s32 256, 256
      %50 = vsyncadd [#allocation18], %s49
      %s51 = sshll.u32 [#allocation19], 4
      %s52 = int_to_ptr.vmem [resolvable:$true] %s51
      %57 = dma.hbm_to_vmem [thread:$0]  %s4, 256, %s52, [#allocation18], 128, 128, 8
    $region13: #{tpu_custom_call.1} parent=1 // pred_fallthru
      _
    // Predicated region
    $region14: #{tpu_custom_call.1} parent=1 // pred_check
      _
    $region15: #{tpu_custom_call.1} parent=1 // pred_check_branch
      %59 = sbr.rel (0) target = $region17
    $region16: #{tpu_custom_call.1} parent=1 // pred_region
      _
    $region17: #{tpu_custom_call.1} parent=1 // pred_fallthru
      _
    // Predicated region
    $region18: #{tpu_custom_call.1} parent=1 // pred_check
      _
    $region19: #{tpu_custom_call.1} parent=1 // pred_check_branch
      %61 = sbr.rel (0) target = $region21
    $region20: #{tpu_custom_call.1} parent=1 // pred_region
      %62 = dma.done [#allocation15], 256
    $region21: #{tpu_custom_call.1} parent=1 // pred_fallthru
      _
    // Predicated region
    $region22: #{tpu_custom_call.1} parent=1 // pred_check
      _
    $region23: #{tpu_custom_call.1} parent=1 // pred_check_branch
      %64 = sbr.rel (0) target = $region25
    $region24: #{tpu_custom_call.1} parent=1 // pred_region
      %65 = dma.done [#allocation18], 256
    $region25: #{tpu_custom_call.1} parent=1 // pred_fallthru
      _
    // Predicated region
    $region26: #{tpu_custom_call.1} parent=1 // pred_check
      _
    $region27: #{tpu_custom_call.1} parent=1 // pred_check_branch
      %67 = sbr.rel (0) target = $region29
    $region28: #{tpu_custom_call.1} parent=1 // pred_region
      %68 = dma.done [#allocation18], 256
    $region29: #{tpu_custom_call.1} parent=1 // pred_fallthru
      _
    %s69 = sadd.s32 0, 0
    %s70 = smul.u32 %s69, 8
    %p71 = scmp.eq.s32.totalorder 0, 0
    // Predicated region
    $region30: #{tpu_custom_call.1} parent=1 // pred_check
      %p72 = pneg %p71
    $region31: #{tpu_custom_call.1} parent=1 // pred_check_branch
      %74 = sbr.rel (%p72) target = $region33
    $region32: #{tpu_custom_call.1} parent=1 // pred_region
      %vm75 = vcmask 0
      %76 = vst.msk [vmem:[#allocation2] sm:$0x1] %vm75, 0.0
    $region33: #{tpu_custom_call.1} parent=1 // pred_fallthru
      _
    loop: start=0, step=1, limit=8
    $region34: #{tpu_custom_call.1} parent=1 // loop_pre_header
      _
    $region35: #{tpu_custom_call.1} parent=1 // loop_header
      %s78 = sphi 0, %s82
      %p79 = scmp.ge.s32.totalorder %s78, 8
    $region36: #{tpu_custom_call.1} parent=1 // loop_header_branch
      %81 = sbr.rel (%p79) target = $region40
    $region37: #{tpu_custom_call.1} parent=1 // loop_body
      %s83 = sadd.s32 %s70, %s78
      %p84 = scmp.lt.s32.totalorder %s83, 7
      %s85 = scalar_select %p84, %s83, 7
      %s86 = sld [smem:[#allocation12 + %s85]]
      %p87 = scmp.gt.s32.totalorder %s86, 0
      %s88 = scalar_select %p87, %s86, 0
      %s89 = sld [smem:[#allocation13 + %s85]]
      %p90 = scmp.gt.s32.totalorder %s89, 0
      %s91 = scalar_select %p90, %s89, 0
      %p92 = scmp.lt.s32.totalorder %s88, 15
      %s93 = scalar_select %p92, %s88, 15
      %p94 = scmp.lt.s32.totalorder %s91, 15
      %s95 = scalar_select %p94, %s91, 15
      %s96 = scalar_lea.vmem [#allocation14], %s93
      %v97 = vld [vmem:[%s96] sm:$0x1]
      %s98 = scalar_lea.vmem [#allocation3], %s78
      %vm99 = vcmask 253952
      %100 = vst.msk [vmem:[%s98] sm:$0x1] %vm99, %v97
      %s101 = scalar_lea.vmem [#allocation14], %s95
      %v102 = vld [vmem:[%s101] sm:$0x1]
      %s103 = scalar_lea.vmem [#allocation4], %s78
      %104 = vst.msk [vmem:[%s103] sm:$0x1] %vm99, %v102
      %s105 = scalar_lea.vmem [#allocation17], %s93
      %v106 = vld [vmem:[%s105] sm:$0x1]
      %s107 = scalar_lea.vmem [#allocation5], %s78
      %108 = vst.msk [vmem:[%s107] sm:$0x1] %vm99, %v106
      %s109 = scalar_lea.vmem [#allocation17], %s95
      %v110 = vld [vmem:[%s109] sm:$0x1]
      %s111 = scalar_lea.vmem [#allocation6], %s78
      %112 = vst.msk [vmem:[%s111] sm:$0x1] %vm99, %v110
      %s113 = scalar_lea.vmem [#allocation19], %s93
      %v114 = vld [vmem:[%s113] sm:$0x1]
      %s115 = scalar_lea.vmem [#allocation7], %s78
      %116 = vst.msk [vmem:[%s115] sm:$0x1] %vm99, %v114
      %s117 = scalar_lea.vmem [#allocation19], %s95
      %v118 = vld [vmem:[%s117] sm:$0x1]
      %s119 = scalar_lea.vmem [#allocation8], %s78
      %120 = vst.msk [vmem:[%s119] sm:$0x1] %vm99, %v118
      %s121 = scalar_lea.vmem %s5, %s93
      %v122 = vld [vmem:[%s121] sm:$0x1]
      %s123 = scalar_lea.vmem [#allocation9], %s78
      %124 = vst.msk [vmem:[%s123] sm:$0x1] %vm99, %v122
      %s125 = scalar_lea.vmem %s5, %s95
      %v126 = vld [vmem:[%s125] sm:$0x1]
      %s127 = scalar_lea.vmem [#allocation10], %s78
      %128 = vst.msk [vmem:[%s127] sm:$0x1] %vm99, %v126
    $region38: #{tpu_custom_call.1} parent=1 // loop_footer
      %s82 = sadd.s32 1, %s78
    $region39: #{tpu_custom_call.1} parent=1 // loop_footer_branch
      %77 = sbr.rel target = $region35
    $region40: #{tpu_custom_call.1} parent=1 // loop_exit
      _
    %v129 = vld [vmem:[#allocation3] sm:$0xff]
    %v130 = vld [vmem:[#allocation4] sm:$0xff]
    %v131 = vld [vmem:[#allocation5] sm:$0xff]
    %v132 = vld [vmem:[#allocation6] sm:$0xff]
    %v133 = vld [vmem:[#allocation7] sm:$0xff]
    %v134 = vld [vmem:[#allocation8] sm:$0xff]
    %v135 = vld [vmem:[#allocation9] sm:$0xff]
    %v136 = vld [vmem:[#allocation10] sm:$0xff]
    %v137 = vmul.f32 %v129, %v129
    %vm138 = vcmask 261120
    %v139 = vsel %vm138, %v137, 0.0
    %140 = vadd.xlane.f32.xlu0 %v139
    %v141 = vpop.xlane.xlu0 %140
    %v142 = vmax.f32 %v141, 1e-16
    %v143 = vrsqrt.pop %v142
    %v144 = vmul.f32 %v130, %v130
    %v145 = vsel %vm138, %v144, 0.0
    %146 = vadd.xlane.f32.xlu0 %v145
    %v147 = vpop.xlane.xlu0 %146
    %v148 = vmax.f32 %v147, 1e-16
    %v149 = vrsqrt.pop %v148
    %v150 = vmul.f32 %v131, %v131
    %v151 = vsel %vm138, %v150, 0.0
    %152 = vadd.xlane.f32.xlu0 %v151
    %v153 = vpop.xlane.xlu0 %152
    %v154 = vmax.f32 %v153, 1e-16
    %v155 = vrsqrt.pop %v154
    %v156 = vmul.f32 %v132, %v132
    %v157 = vsel %vm138, %v156, 0.0
    %158 = vadd.xlane.f32.xlu0 %v157
    %v159 = vpop.xlane.xlu0 %158
    %v160 = vmax.f32 %v159, 1e-16
    %v161 = vrsqrt.pop %v160
    %v162 = vmul.f32 %v129, %v132
    %v163 = vsel %vm138, %v162, 0.0
    %164 = vadd.xlane.f32.xlu0 %v163
    %v165 = vpop.xlane.xlu0 %164
    %v166 = vmul.f32 %v143, %v161
    %v167 = vmul.f32 %v165, %v166
    %v168 = vmul.f32 %v129, %v130
    %v169 = vsel %vm138, %v168, 0.0
    %170 = vadd.xlane.f32.xlu0 %v169
    %v171 = vpop.xlane.xlu0 %170
    %v172 = vmul.f32 %v143, %v149
    %v173 = vmul.f32 %v171, %v172
    %v174 = vadd.f32 %v167, %v173
    %v175 = vmul.f32 %v131, %v132
    %v176 = vsel %vm138, %v175, 0.0
    %177 = vadd.xlane.f32.xlu0 %v176
    %v178 = vpop.xlane.xlu0 %177
    %v179 = vmul.f32 %v155, %v161
    %v180 = vmul.f32 %v178, %v179
    %v181 = vadd.f32 %v174, %v180
    %v182 = vsub.f32 0.0, %v181
    %v183 = vmax.f32 %v182, 0.0
    %v184 = vand.u32 2147483647, %v181
    %v185 = vsub.f32 0.0, %v184
    %v186 = vmul.f32 %v185, 1.442695
    %v187 = vpow.pop %v186
    %v188 = vadd.f32 %v187, 1.0
    %v189 = vlog2.pop %v188
    %v190 = vmul.f32 %v189, 0.6931472
    %v191 = vmul.f32 -0.5, %v187
    %v192 = vadd.f32 %v191, 1.0
    %v193 = vmul.f32 %v192, %v187
    %v194 = vand.u32 2147483647, %v187
    %vm195 = vcmp.lt.f32.partialorder %v194, 0.0004427343
    %v196 = vsel %vm195, %v193, %v190
    %v197 = vadd.f32 %v183, %v196
    %v198 = vmul.f32 %v133, %v134
    %v199 = vsel %vm138, %v198, 0.0
    %200 = vadd.xlane.f32.xlu0 %v199
    %v201 = vpop.xlane.xlu0 %200
    %v202 = vmul.f32 %v133, %v133
    %v203 = vsel %vm138, %v202, 0.0
    %204 = vadd.xlane.f32.xlu0 %v203
    %v205 = vpop.xlane.xlu0 %204
    %v206 = vmax.f32 %v205, 1e-16
    %v207 = vrsqrt.pop %v206
    %v208 = vmul.f32 %v134, %v134
    %v209 = vsel %vm138, %v208, 0.0
    %210 = vadd.xlane.f32.xlu0 %v209
    %v211 = vpop.xlane.xlu0 %210
    %v212 = vmax.f32 %v211, 1e-16
    %v213 = vrsqrt.pop %v212
    %v214 = vmul.f32 %v207, %v213
    %v215 = vmul.f32 %v201, %v214
    %v216 = vsub.f32 0.0, %v215
    %v217 = vmax.f32 %v216, 0.0
    %v218 = vand.u32 2147483647, %v215
    %v219 = vsub.f32 0.0, %v218
    %v220 = vmul.f32 %v219, 1.442695
    %v221 = vpow.pop %v220
    %v222 = vadd.f32 %v221, 1.0
    %v223 = vlog2.pop %v222
    %v224 = vmul.f32 %v223, 0.6931472
    %v225 = vmul.f32 -0.5, %v221
    %v226 = vadd.f32 %v225, 1.0
    %v227 = vmul.f32 %v226, %v221
    %v228 = vand.u32 2147483647, %v221
    %vm229 = vcmp.lt.f32.partialorder %v228, 0.0004427343
    %v230 = vsel %vm229, %v227, %v224
    %v231 = vadd.f32 %v217, %v230
    %v232 = vmul.f32 %v231, 0.1
    %v233 = vadd.f32 %v197, %v232
    %v234 = vmul.f32 %v135, %v136
    %v235 = vsel %vm138, %v234, 0.0
    %236 = vadd.xlane.f32.xlu0 %v235
    %v237 = vpop.xlane.xlu0 %236
    %v238 = vmul.f32 %v135, %v135
    %v239 = vsel %vm138, %v238, 0.0
    %240 = vadd.xlane.f32.xlu0 %v239
    %v241 = vpop.xlane.xlu0 %240
    %v242 = vmax.f32 %v241, 1e-16
    %v243 = vrsqrt.pop %v242
    %v244 = vmul.f32 %v136, %v136
    %v245 = vsel %vm138, %v244, 0.0
    %246 = vadd.xlane.f32.xlu0 %v245
    %v247 = vpop.xlane.xlu0 %246
    %v248 = vmax.f32 %v247, 1e-16
    %v249 = vrsqrt.pop %v248
    %v250 = vmul.f32 %v243, %v249
    %v251 = vmul.f32 %v237, %v250
    %v252 = vsub.f32 0.0, %v251
    %v253 = vmax.f32 %v252, 0.0
    %v254 = vand.u32 2147483647, %v251
    %v255 = vsub.f32 0.0, %v254
    %v256 = vmul.f32 %v255, 1.442695
    %v257 = vpow.pop %v256
    %v258 = vadd.f32 %v257, 1.0
    %v259 = vlog2.pop %v258
    %v260 = vmul.f32 %v259, 0.6931472
    %v261 = vmul.f32 -0.5, %v257
    %v262 = vadd.f32 %v261, 1.0
    %v263 = vmul.f32 %v262, %v257
    %v264 = vand.u32 2147483647, %v257
    %vm265 = vcmp.lt.f32.partialorder %v264, 0.0004427343
    %v266 = vsel %vm265, %v263, %v260
    %v267 = vadd.f32 %v253, %v266
    %v268 = vmul.f32 %v267, 0.1
    %v269 = vadd.f32 %v233, %v268
    %v270 = vlaneseq
    %v271 = vshrl.u32 %v270, 7
    %v272 = vstv %s70
    %v273 = vadd.s32 %v272, %v271
    %vm274 = vcmp.lt.s32.totalorder %v273, 8
    %v275 = vsel %vm274, %v269, 0.0
    %v276 = vld [vmem:[#allocation2] sm:$0x1]
    %v277 = vrot.slane %v275, 4
    %v278 = vadd.f32 %v275, %v277
    %v279 = vrot.slane %v278, 2
    %v280 = vadd.f32 %v278, %v279
    %v281 = vrot.slane %v280, 1
    %v282 = vadd.f32 %v280, %v281
    %v283 = vadd.f32 %v276, %v282
    %vm284 = vcmask 0
    %285 = vst.msk [vmem:[#allocation2] sm:$0x1] %vm284, %v283
    // Predicated region
    $region41: #{tpu_custom_call.1} parent=1 // pred_check
      %p286 = pneg %p71
    $region42: #{tpu_custom_call.1} parent=1 // pred_check_branch
      %288 = sbr.rel (%p286) target = $region44
    $region43: #{tpu_custom_call.1} parent=1 // pred_region
      %v289 = vld [vmem:[#allocation2] sm:$0x1]
      %290 = vst.msk [vmem:[#allocation20] sm:$0x1] %vm284, %v289
    $region44: #{tpu_custom_call.1} parent=1 // pred_fallthru
      _
    // Predicated region
    $region45: #{tpu_custom_call.1} parent=1 // pred_check
      _
    $region46: #{tpu_custom_call.1} parent=1 // pred_check_branch
      %292 = sbr.rel (0) target = $region48
    $region47: #{tpu_custom_call.1} parent=1 // pred_region
      %s294 = ssub.s32 16, 16
      %295 = vsyncadd [#allocation16], %s294
      %s297 = sshll.u32 [#allocation20], 4
      %s298 = int_to_ptr.vmem [resolvable:$true] %s297
      %300 = dma.vmem_to_hbm [thread:$0]  %s298, 16, %s6, [#allocation16]
    $region48: #{tpu_custom_call.1} parent=1 // pred_fallthru
      _
    // Predicated region
    $region49: #{tpu_custom_call.1} parent=1 // pred_check
      _
    $region50: #{tpu_custom_call.1} parent=1 // pred_check_branch
      %302 = sbr.rel (0) target = $region52
    $region51: #{tpu_custom_call.1} parent=1 // pred_region
      %303 = dma.done [#allocation16], 16
    $region52: #{tpu_custom_call.1} parent=1 // pred_fallthru
      _
    %304 = vsyncpa [#allocation15], 1
    %305 = vsyncpa [#allocation18], 1
    %306 = vsyncpa [#allocation16], 1

</llo_original>
